<compile_context>
chip_gen: v5e
topology: v5e:2x2
jax: 0.10.0
libtpu: 0.0.40
codegen_flags: <defaults>
</compile_context>

<pallas_src>
import functools

import jax
import jax.numpy as jnp
from jax.experimental import pallas as pl
from jax.experimental.pallas import tpu as pltpu

LANE = 128
SUBLANE = 8


def _round_up(x, m):
    return (x + m - 1) // m * m


def _pad2d(x, rows, cols):
    return jnp.pad(x, ((0, rows - x.shape[0]), (0, cols - x.shape[1])))


# ----------------------------- Pallas kernel ------------------------------- #

def fused_gcn_kernel(a_ref, x_ref, wc_ref, bc_ref, p_ref,
                     w1_ref, b1_ref, w2_ref, b2_ref, o_ref, *, num_layers):
    """Entire GCN forward in one kernel; A_hat and features stay resident in VMEM.

    h_0 = A @ (X @ W_0) + b_0
    h_l = A @ (relu(h_{l-1}) @ W_l) + b_l,   l = 1..L-1
    out = relu((P @ h_{L-1}) @ W_lin1 + b_lin1) @ W_lin2 + b_lin2
    """
    a = a_ref[...]                      # (Np, Np)  matmul dtype (bf16 or f32)
    mm_dtype = a.dtype

    # --- GCNConv stack (unrolled; XW computed once per layer, then aggregated) ---
    feats = x_ref[...]                  # (Np, Hp)  matmul dtype
    h = None
    for l in range(num_layers):
        if l > 0:
            feats = jnp.maximum(h, 0.0).astype(mm_dtype)     # ReLU in f32, cast for MXU
        xw = jnp.dot(feats, wc_ref[l], preferred_element_type=jnp.float32)
        h = jnp.dot(a, xw.astype(mm_dtype),
                    preferred_element_type=jnp.float32) + bc_ref[l]      # (Np, Hp) f32

    # --- global_mean_pool as a matmul with the dense (G, N) pooling operator ---
    pooled = jnp.dot(p_ref[...], h.astype(mm_dtype),
                     preferred_element_type=jnp.float32)                 # (Gp, Hp) f32
    # TODO(synk): dropout(p=0.5) is identity in eval mode; skipped.

    # --- MLP head ---
    hid = jnp.dot(pooled.astype(mm_dtype), w1_ref[...],
                  preferred_element_type=jnp.float32) + b1_ref[...]
    hid = jnp.maximum(hid, 0.0)
    out = jnp.dot(hid.astype(mm_dtype), w2_ref[...],
                  preferred_element_type=jnp.float32) + b2_ref[...]
    o_ref[...] = out                                                     # (Gp, 128) lane-dense


_VMEM = pl.BlockSpec(memory_space=pltpu.MemorySpace.VMEM)


# ------------------------------ Pallas wrapper ------------------------------ #

def gcn_forward(params, x, edge_index, batch, num_graphs, *, use_bf16=True):
    n, _ = x.shape
    hidden = params["conv1_w"].shape[1]
    mid = params["lin1_w"].shape[1]
    num_layers = 1 + len(params["convs"])

    mm_dtype = jnp.bfloat16 if use_bf16 else jnp.float32

    # Lane/sublane-dense padded shapes (zero padding is exact: padded rows/cols of
    # A_hat, P, W and b are zero, so real outputs are untouched).
    n_pad = max(_round_up(n, LANE), LANE)        # dense K dim for A@(XW) and P@h
    h_pad = max(_round_up(hidden, LANE), LANE)   # 128-lane-dense features
    m_pad = max(_round_up(mid, LANE), LANE)
    g_pad = max(_round_up(num_graphs, SUBLANE), SUBLANE)
    o_pad = LANE                                 # lane-dense head output slab

    # --- glue (plain JAX): dense normalized adjacency + mean-pool operator ---
    a_hat = build_normalized_adj(edge_index, n)          # (N, N) f32
    pool = build_pool_matrix(batch, num_graphs)          # (G, N) f32

    a_p = _pad2d(a_hat, n_pad, n_pad).astype(mm_dtype)
    x_p = _pad2d(x.astype(jnp.float32), n_pad, h_pad).astype(mm_dtype)
    p_p = _pad2d(pool, g_pad, n_pad).astype(mm_dtype)

    conv_ws = [params["conv1_w"]] + [w for (w, _) in params["convs"]]
    conv_bs = [params["conv1_b"]] + [b for (_, b) in params["convs"]]
    wc = jnp.stack([_pad2d(w, h_pad, h_pad) for w in conv_ws]).astype(mm_dtype)   # (L,Hp,Hp)
    bc = jnp.stack([jnp.pad(b, (0, h_pad - b.shape[0])) for b in conv_bs])        # (L,Hp) f32
    bc = bc.reshape(num_layers, 1, h_pad).astype(jnp.float32)                     # (L,1,Hp)

    w1_p = _pad2d(params["lin1_w"], h_pad, m_pad).astype(mm_dtype)
    b1_p = jnp.pad(params["lin1_b"], (0, m_pad - mid)).reshape(1, m_pad).astype(jnp.float32)
    w2_p = _pad2d(params["lin2_w"], m_pad, o_pad).astype(mm_dtype)
    b2_p = jnp.pad(params["lin2_b"], (0, o_pad - 1)).reshape(1, o_pad).astype(jnp.float32)

    operands = (a_p, x_p, wc, bc, p_p, w1_p, b1_p, w2_p, b2_p)
    total_bytes = sum(op.size * op.dtype.itemsize for op in operands) + g_pad * o_pad * 4
    # Raise scoped VMEM above the 16/32 MiB defaults, but stay well under v7x's 64 MiB.
    vmem_limit = int(min(48 * 2**20, max(32 * 2**20, 3 * total_bytes)))

    out = pl.pallas_call(
        functools.partial(fused_gcn_kernel, num_layers=num_layers),
        out_shape=jax.ShapeDtypeStruct((g_pad, o_pad), jnp.float32),
        in_specs=[_VMEM] * len(operands),
        out_specs=_VMEM,
        compiler_params=pltpu.CompilerParams(vmem_limit_bytes=vmem_limit),
    )(*operands)

    # Flatten: view(G). Real result lives in rows :G, column 0 of the lane-dense slab.
    return out[:num_graphs, 0]


# ------------------------------- glue (JAX) --------------------------------- #

def build_normalized_adj(edge_index, num_nodes):
    """Dense D^{-1/2} (A + I) D^{-1/2} (GCNConv normalization with self-loops).

    NOTE: duplicate edges in edge_index are counted with multiplicity (demo has none).
    """
    src, dst = edge_index[0], edge_index[1]
    a = jnp.zeros((num_nodes, num_nodes), jnp.float32)
    a = a.at[dst, src].add(1.0)
    a = a + jnp.eye(num_nodes, dtype=jnp.float32)
    deg = a.sum(axis=1)
    d_inv_sqrt = jnp.where(deg > 0, jax.lax.rsqrt(deg), 0.0)
    return d_inv_sqrt[:, None] * a * d_inv_sqrt[None, :]


def build_pool_matrix(batch, num_graphs):
    """(G, N) matrix with row g = 1/|graph g| on nodes of graph g (global_mean_pool)."""
    onehot = (batch[None, :] == jnp.arange(num_graphs)[:, None]).astype(jnp.float32)
    counts = onehot.sum(axis=1, keepdims=True)
    return onehot / jnp.maximum(counts, 1.0)


def init_params(key, num_layers, hidden, in_dim=2):
    keys = jax.random.split(key, 2 * (num_layers + 2))
    params = {}
    k = iter(keys)
    params["conv1_w"] = jax.random.normal(next(k), (in_dim, hidden), jnp.float32) * 0.1
    params["conv1_b"] = jax.random.normal(next(k), (hidden,), jnp.float32) * 0.1
    params["convs"] = []
    for _ in range(num_layers - 1):
        w = jax.random.normal(next(k), (hidden, hidden), jnp.float32) * 0.1
        b = jax.random.normal(next(k), (hidden,), jnp.float32) * 0.1
        params["convs"].append((w, b))
    params["lin1_w"] = jax.random.normal(next(k), (hidden, hidden // 2), jnp.float32) * 0.1
    params["lin1_b"] = jax.random.normal(next(k), (hidden // 2,), jnp.float32) * 0.1
    params["lin2_w"] = jax.random.normal(next(k), (hidden // 2, 1), jnp.float32) * 0.1
    params["lin2_b"] = jax.random.normal(next(k), (1,), jnp.float32) * 0.1
    # NOTE: `self.lin = Linear(hidden, 1)` in the PyTorch module is never used in forward.
    return params


def gcn_reference(params, x, edge_index, batch, num_graphs):
    """Pure-JAX f32 reference of the same forward pass (for a sanity check)."""
    a_hat = build_normalized_adj(edge_index, x.shape[0])
    pool = build_pool_matrix(batch, num_graphs)
    h = a_hat @ (x @ params["conv1_w"]) + params["conv1_b"]
    for (w, b) in params["convs"]:
        h = a_hat @ (jnp.maximum(h, 0.0) @ w) + b
    pooled = pool @ h
    hid = jnp.maximum(pooled @ params["lin1_w"] + params["lin1_b"], 0.0)
    out = hid @ params["lin2_w"] + params["lin2_b"]
    return out.reshape(num_graphs)


# ---------------------------------- main ------------------------------------ #

if __name__ == "__main__":
    key = jax.random.PRNGKey(0)
    num_layers = 3
    hidden = 32
    num_nodes = 16
    num_graphs = 2  # 8 nodes per graph

    k_x, k_p = jax.random.split(key)
    x = jax.random.normal(k_x, (num_nodes, 2), jnp.float32)

    # Two ring graphs of 8 nodes each, edges stored symmetrically (both directions).
    def ring_edges(offset, n):
        src = jnp.arange(n) + offset
        dst = (jnp.arange(n) + 1) % n + offset
        return jnp.stack([jnp.concatenate([src, dst]),
                          jnp.concatenate([dst, src])], axis=0)

    e0 = ring_edges(0, 8)
    e1 = ring_edges(8, 8)
    edge_index = jnp.concatenate([e0, e1], axis=1).astype(jnp.int32)
    batch = jnp.concatenate([jnp.zeros(8, jnp.int32), jnp.ones(8, jnp.int32)])

    params = init_params(k_p, num_layers, hidden)

    out = gcn_forward(params, x, edge_index, batch, num_graphs, use_bf16=True)
    out = jax.block_until_ready(out)
    assert out.shape == (num_graphs,)

    # Loose-tolerance sanity check against the f32 JAX reference (bf16 matmul operands).
    ref = gcn_reference(params, x, edge_index, batch, num_graphs)
    assert jnp.allclose(out, ref, atol=5e-2, rtol=1e-1), (out, ref)

    print("KERNEL_OK")
</pallas_src>

<mosaic_0001>
module attributes {stable_mosaic.version = 11 : i64} {
  func.func @fused_gcn_kernel(%arg0: memref<128x128xbf16, #tpu.memory_space<vmem>>, %arg1: memref<128x128xbf16, #tpu.memory_space<vmem>>, %arg2: memref<3x128x128xbf16, #tpu.memory_space<vmem>>, %arg3: memref<3x1x128xf32, #tpu.memory_space<vmem>>, %arg4: memref<8x128xbf16, #tpu.memory_space<vmem>>, %arg5: memref<128x128xbf16, #tpu.memory_space<vmem>>, %arg6: memref<1x128xf32, #tpu.memory_space<vmem>>, %arg7: memref<128x128xbf16, #tpu.memory_space<vmem>>, %arg8: memref<1x128xf32, #tpu.memory_space<vmem>>, %arg9: memref<8x128xf32, #tpu.memory_space<vmem>>) attributes {dimension_semantics = [], scalar_prefetch = 0 : i64, scratch_operands = 0 : i64, tpu.core_type = #tpu.core_type<tc>} {
    %c0 = arith.constant 0 : index
    %c0_0 = arith.constant 0 : index
    %0 = vector.load %arg0[%c0, %c0_0] : memref<128x128xbf16, #tpu.memory_space<vmem>>, vector<128x128xbf16>
    %c0_1 = arith.constant 0 : index
    %c0_2 = arith.constant 0 : index
    %1 = vector.load %arg1[%c0_1, %c0_2] : memref<128x128xbf16, #tpu.memory_space<vmem>>, vector<128x128xbf16>
    %c0_3 = arith.constant 0 : index
    %c0_4 = arith.constant 0 : index
    %c0_5 = arith.constant 0 : index
    %2 = vector.load %arg2[%c0_3, %c0_4, %c0_5] : memref<3x128x128xbf16, #tpu.memory_space<vmem>>, vector<1x128x128xbf16>
    %3 = vector.shape_cast %2 : vector<1x128x128xbf16> to vector<128x128xbf16>
    %cst = arith.constant dense<0.000000e+00> : vector<128x128xf32>
    %4 = tpu.matmul %1, %3, %cst {dimension_numbers = #tpu.dot_dimension_numbers<[1], [0], [0], [1], [0, 0, 1, 1], [], []>} : vector<128x128xbf16>, vector<128x128xbf16>, vector<128x128xf32> -> vector<128x128xf32>
    %5 = arith.truncf %4 : vector<128x128xf32> to vector<128x128xbf16>
    %cst_6 = arith.constant dense<0.000000e+00> : vector<128x128xf32>
    %6 = tpu.matmul %0, %5, %cst_6 {dimension_numbers = #tpu.dot_dimension_numbers<[1], [0], [0], [1], [0, 0, 1, 1], [], []>} : vector<128x128xbf16>, vector<128x128xbf16>, vector<128x128xf32> -> vector<128x128xf32>
    %c0_7 = arith.constant 0 : index
    %c0_8 = arith.constant 0 : index
    %c0_9 = arith.constant 0 : index
    %7 = vector.load %arg3[%c0_7, %c0_8, %c0_9] : memref<3x1x128xf32, #tpu.memory_space<vmem>>, vector<1x1x128xf32>
    %8 = vector.shape_cast %7 : vector<1x1x128xf32> to vector<1x128xf32>
    %9 = vector.broadcast %8 : vector<1x128xf32> to vector<128x128xf32>
    %10 = arith.addf %6, %9 : vector<128x128xf32>
    %cst_10 = arith.constant 0.000000e+00 : f32
    %11 = vector.broadcast %cst_10 : f32 to vector<128x128xf32>
    %12 = arith.maximumf %10, %11 : vector<128x128xf32>
    %13 = arith.truncf %12 : vector<128x128xf32> to vector<128x128xbf16>
    %c1 = arith.constant 1 : index
    %c0_11 = arith.constant 0 : index
    %c0_12 = arith.constant 0 : index
    %14 = vector.load %arg2[%c1, %c0_11, %c0_12] : memref<3x128x128xbf16, #tpu.memory_space<vmem>>, vector<1x128x128xbf16>
    %15 = vector.shape_cast %14 : vector<1x128x128xbf16> to vector<128x128xbf16>
    %cst_13 = arith.constant dense<0.000000e+00> : vector<128x128xf32>
    %16 = tpu.matmul %13, %15, %cst_13 {dimension_numbers = #tpu.dot_dimension_numbers<[1], [0], [0], [1], [0, 0, 1, 1], [], []>} : vector<128x128xbf16>, vector<128x128xbf16>, vector<128x128xf32> -> vector<128x128xf32>
    %17 = arith.truncf %16 : vector<128x128xf32> to vector<128x128xbf16>
    %cst_14 = arith.constant dense<0.000000e+00> : vector<128x128xf32>
    %18 = tpu.matmul %0, %17, %cst_14 {dimension_numbers = #tpu.dot_dimension_numbers<[1], [0], [0], [1], [0, 0, 1, 1], [], []>} : vector<128x128xbf16>, vector<128x128xbf16>, vector<128x128xf32> -> vector<128x128xf32>
    %c1_15 = arith.constant 1 : index
    %c0_16 = arith.constant 0 : index
    %c0_17 = arith.constant 0 : index
    %19 = vector.load %arg3[%c1_15, %c0_16, %c0_17] : memref<3x1x128xf32, #tpu.memory_space<vmem>>, vector<1x1x128xf32>
    %20 = vector.shape_cast %19 : vector<1x1x128xf32> to vector<1x128xf32>
    %21 = vector.broadcast %20 : vector<1x128xf32> to vector<128x128xf32>
    %22 = arith.addf %18, %21 : vector<128x128xf32>
    %cst_18 = arith.constant 0.000000e+00 : f32
    %23 = vector.broadcast %cst_18 : f32 to vector<128x128xf32>
    %24 = arith.maximumf %22, %23 : vector<128x128xf32>
    %25 = arith.truncf %24 : vector<128x128xf32> to vector<128x128xbf16>
    %c2 = arith.constant 2 : index
    %c0_19 = arith.constant 0 : index
    %c0_20 = arith.constant 0 : index
    %26 = vector.load %arg2[%c2, %c0_19, %c0_20] : memref<3x128x128xbf16, #tpu.memory_space<vmem>>, vector<1x128x128xbf16>
    %27 = vector.shape_cast %26 : vector<1x128x128xbf16> to vector<128x128xbf16>
    %cst_21 = arith.constant dense<0.000000e+00> : vector<128x128xf32>
    %28 = tpu.matmul %25, %27, %cst_21 {dimension_numbers = #tpu.dot_dimension_numbers<[1], [0], [0], [1], [0, 0, 1, 1], [], []>} : vector<128x128xbf16>, vector<128x128xbf16>, vector<128x128xf32> -> vector<128x128xf32>
    %29 = arith.truncf %28 : vector<128x128xf32> to vector<128x128xbf16>
    %cst_22 = arith.constant dense<0.000000e+00> : vector<128x128xf32>
    %30 = tpu.matmul %0, %29, %cst_22 {dimension_numbers = #tpu.dot_dimension_numbers<[1], [0], [0], [1], [0, 0, 1, 1], [], []>} : vector<128x128xbf16>, vector<128x128xbf16>, vector<128x128xf32> -> vector<128x128xf32>
    %c2_23 = arith.constant 2 : index
    %c0_24 = arith.constant 0 : index
    %c0_25 = arith.constant 0 : index
    %31 = vector.load %arg3[%c2_23, %c0_24, %c0_25] : memref<3x1x128xf32, #tpu.memory_space<vmem>>, vector<1x1x128xf32>
    %32 = vector.shape_cast %31 : vector<1x1x128xf32> to vector<1x128xf32>
    %33 = vector.broadcast %32 : vector<1x128xf32> to vector<128x128xf32>
    %34 = arith.addf %30, %33 : vector<128x128xf32>
    %c0_26 = arith.constant 0 : index
    %c0_27 = arith.constant 0 : index
    %35 = vector.load %arg4[%c0_26, %c0_27] : memref<8x128xbf16, #tpu.memory_space<vmem>>, vector<8x128xbf16>
    %36 = arith.truncf %34 : vector<128x128xf32> to vector<128x128xbf16>
    %cst_28 = arith.constant dense<0.000000e+00> : vector<8x128xf32>
    %37 = tpu.matmul %35, %36, %cst_28 {dimension_numbers = #tpu.dot_dimension_numbers<[1], [0], [0], [1], [0, 0, 1, 1], [], []>} : vector<8x128xbf16>, vector<128x128xbf16>, vector<8x128xf32> -> vector<8x128xf32>
    %38 = arith.truncf %37 : vector<8x128xf32> to vector<8x128xbf16>
    %c0_29 = arith.constant 0 : index
    %c0_30 = arith.constant 0 : index
    %39 = vector.load %arg5[%c0_29, %c0_30] : memref<128x128xbf16, #tpu.memory_space<vmem>>, vector<128x128xbf16>
    %cst_31 = arith.constant dense<0.000000e+00> : vector<8x128xf32>
    %40 = tpu.matmul %38, %39, %cst_31 {dimension_numbers = #tpu.dot_dimension_numbers<[1], [0], [0], [1], [0, 0, 1, 1], [], []>} : vector<8x128xbf16>, vector<128x128xbf16>, vector<8x128xf32> -> vector<8x128xf32>
    %c0_32 = arith.constant 0 : index
    %c0_33 = arith.constant 0 : index
    %41 = vector.load %arg6[%c0_32, %c0_33] : memref<1x128xf32, #tpu.memory_space<vmem>>, vector<1x128xf32>
    %42 = vector.broadcast %41 : vector<1x128xf32> to vector<8x128xf32>
    %43 = arith.addf %40, %42 : vector<8x128xf32>
    %cst_34 = arith.constant 0.000000e+00 : f32
    %44 = vector.broadcast %cst_34 : f32 to vector<8x128xf32>
    %45 = arith.maximumf %43, %44 : vector<8x128xf32>
    %46 = arith.truncf %45 : vector<8x128xf32> to vector<8x128xbf16>
    %c0_35 = arith.constant 0 : index
    %c0_36 = arith.constant 0 : index
    %47 = vector.load %arg7[%c0_35, %c0_36] : memref<128x128xbf16, #tpu.memory_space<vmem>>, vector<128x128xbf16>
    %cst_37 = arith.constant dense<0.000000e+00> : vector<8x128xf32>
    %48 = tpu.matmul %46, %47, %cst_37 {dimension_numbers = #tpu.dot_dimension_numbers<[1], [0], [0], [1], [0, 0, 1, 1], [], []>} : vector<8x128xbf16>, vector<128x128xbf16>, vector<8x128xf32> -> vector<8x128xf32>
    %c0_38 = arith.constant 0 : index
    %c0_39 = arith.constant 0 : index
    %49 = vector.load %arg8[%c0_38, %c0_39] : memref<1x128xf32, #tpu.memory_space<vmem>>, vector<1x128xf32>
    %50 = vector.broadcast %49 : vector<1x128xf32> to vector<8x128xf32>
    %51 = arith.addf %48, %50 : vector<8x128xf32>
    %c0_40 = arith.constant 0 : index
    %c0_41 = arith.constant 0 : index
    %52 = vector.load %arg9[%c0_40, %c0_41] : memref<8x128xf32, #tpu.memory_space<vmem>>, vector<8x128xf32>
    tpu.vector_store %arg9[%c0_40, %c0_41], %51 {strides = array<i32>} : memref<8x128xf32, #tpu.memory_space<vmem>>, vector<8x128xf32>,
    return
  }
}

</mosaic_0001>

<llo_original>
// kernel: tpu_custom_call.1
$region0: #{tpu_custom_call.1}
  #allocation0 [shape = 'u32[]', space=smem, size = 0x4, offset = 0x4, fixed_abs, tag = 'smem constant byte address 0x4 - core index']
  #allocation1 [shape = 'u32[72,128]{1,0:T(1,128)}', space=vmem, size = 0x9000, scoped, tag = 'internal scratch']
  %s0 = inlined_call_operand.hbm [shape: bf16[128,128], index: 0, kind: input, shape index: {}]
  %s1 = inlined_call_operand.hbm [shape: bf16[128,128], index: 1, kind: input, shape index: {}]
  %s2 = inlined_call_operand.hbm [shape: bf16[3,128,128], index: 2, kind: input, shape index: {}]
  %s3 = inlined_call_operand.hbm [shape: f32[3,1,128], index: 3, kind: input, shape index: {}]
  %s4 = inlined_call_operand.hbm [shape: bf16[8,128], index: 4, kind: input, shape index: {}]
  %s5 = inlined_call_operand.hbm [shape: bf16[128,128], index: 5, kind: input, shape index: {}]
  %s6 = inlined_call_operand.vmem [shape: f32[1,128], index: 6, kind: input, shape index: {}]
  %s7 = inlined_call_operand.hbm [shape: bf16[128,128], index: 7, kind: input, shape index: {}]
  %s8 = inlined_call_operand.vmem [shape: f32[1,128], index: 8, kind: input, shape index: {}]
  %s9 = inlined_call_operand.hbm [shape: f32[8,128], index: 9, kind: output, shape index: {}]
  %s10 = sld [smem:[#allocation0]]
  $region74: #{tpu_custom_call.1} parent=0
    _
  %s12 = ssub.s32 1, %s10
  %s13 = scalar_select 0, %s12, %s10
  $region1: #{tpu_custom_call.1} parent=0
    #allocation2 [shape = 'u8[32768]{0}', space=vmem, size = 0x8000, scoped, tag = 'input window, operand 0, single buffered']
    #allocation3 [shape = 's32[1]{0}', space=sflag, size = 0x4, scoped, tag = 'scoped memory for tpu_custom_call.1']
    #allocation4 [shape = 's32[1]{0}', space=sflag, size = 0x4, scoped, tag = 'scoped memory for tpu_custom_call.1']
    #allocation5 [shape = 'u8[32768]{0}', space=vmem, size = 0x8000, scoped, tag = 'input window, operand 1, single buffered']
    #allocation6 [shape = 's32[1]{0}', space=sflag, size = 0x4, scoped, tag = 'scoped memory for tpu_custom_call.1']
    #allocation7 [shape = 'u8[98304]{0}', space=vmem, size = 0x18000, scoped, tag = 'input window, operand 2, single buffered']
    #allocation8 [shape = 'u8[1536]{0}', space=vmem, size = 0x800, scoped, tag = 'input window, operand 3, single buffered']
    #allocation9 [shape = 's32[1]{0}', space=sflag, size = 0x4, scoped, tag = 'scoped memory for tpu_custom_call.1']
    #allocation10 [shape = 'u8[2048]{0}', space=vmem, size = 0x800, scoped, tag = 'input window, operand 4, single buffered']
    #allocation11 [shape = 'u8[32768]{0}', space=vmem, size = 0x8000, scoped, tag = 'input window, operand 5, single buffered']
    #allocation12 [shape = 's32[1]{0}', space=sflag, size = 0x4, scoped, tag = 'scoped memory for tpu_custom_call.1']
    #allocation13 [shape = 'u8[32768]{0}', space=vmem, size = 0x8000, scoped, tag = 'input window, operand 7, single buffered']
    #allocation14 [shape = 'u8[4096]{0}', space=vmem, size = 0x1000, scoped, tag = 'output window, operand 0, single buffered']
    %14 = vsyncpa [#allocation3], 0
    %15 = vsyncpa [#allocation6], 0
    %16 = vsyncpa [#allocation9], 0
    %17 = vsyncpa [#allocation12], 0
    %18 = vsyncpa [#allocation4], 0
    // Predicated region
    $region2: #{tpu_custom_call.1} parent=1 // pred_check
      _
    $region3: #{tpu_custom_call.1} parent=1 // pred_check_branch
      %20 = sbr.rel (0) target = $region5
    $region4: #{tpu_custom_call.1} parent=1 // pred_region
      %22 = vsyncadd [#allocation3], 0
      %s23 = sshll.u32 %s0, 4
      %s24 = int_to_ptr.hbm [resolvable:$true] %s23
      %s25 = sshll.u32 [#allocation2], 4
      %s26 = int_to_ptr.vmem [resolvable:$true] %s25
      %31 = dma.hbm_to_vmem [thread:$0]  %s24, 1024, %s26, [#allocation3], 64, 64, 4
    $region5: #{tpu_custom_call.1} parent=1 // pred_fallthru
      _
    // Predicated region
    $region6: #{tpu_custom_call.1} parent=1 // pred_check
      _
    $region7: #{tpu_custom_call.1} parent=1 // pred_check_branch
      %33 = sbr.rel (0) target = $region9
    $region8: #{tpu_custom_call.1} parent=1 // pred_region
      %35 = vsyncadd [#allocation6], 0
      %s36 = sshll.u32 %s1, 4
      %s37 = int_to_ptr.hbm [resolvable:$true] %s36
      %s38 = sshll.u32 [#allocation5], 4
      %s39 = int_to_ptr.vmem [resolvable:$true] %s38
      %44 = dma.hbm_to_vmem [thread:$0]  %s37, 1024, %s39, [#allocation6], 64, 64, 4
    $region9: #{tpu_custom_call.1} parent=1 // pred_fallthru
      _
    // Predicated region
    $region10: #{tpu_custom_call.1} parent=1 // pred_check
      _
    $region11: #{tpu_custom_call.1} parent=1 // pred_check_branch
      %46 = sbr.rel (0) target = $region13
    $region12: #{tpu_custom_call.1} parent=1 // pred_region
      %48 = vsyncadd [#allocation6], 0
      %s49 = sshll.u32 %s2, 4
      %s50 = int_to_ptr.hbm [resolvable:$true] %s49
      %s51 = sshll.u32 [#allocation7], 4
      %s52 = int_to_ptr.vmem [resolvable:$true] %s51
      %57 = dma.hbm_to_vmem [thread:$0]  %s50, 3072, %s52, [#allocation6], 64, 64, 4
    $region13: #{tpu_custom_call.1} parent=1 // pred_fallthru
      _
    // Predicated region
    $region14: #{tpu_custom_call.1} parent=1 // pred_check
      _
    $region15: #{tpu_custom_call.1} parent=1 // pred_check_branch
      %59 = sbr.rel (0) target = $region17
    $region16: #{tpu_custom_call.1} parent=1 // pred_region
      %61 = vsyncadd [#allocation9], 0
      %s62 = sshll.u32 %s3, 4
      %s63 = int_to_ptr.hbm [resolvable:$true] %s62
      %s64 = sshll.u32 [#allocation8], 4
      %s65 = int_to_ptr.vmem [resolvable:$true] %s64
      %70 = dma.hbm_to_vmem [thread:$0]  %s63, 48, %s65, [#allocation9], 16, 16, 1
    $region17: #{tpu_custom_call.1} parent=1 // pred_fallthru
      _
    // Predicated region
    $region18: #{tpu_custom_call.1} parent=1 // pred_check
      _
    $region19: #{tpu_custom_call.1} parent=1 // pred_check_branch
      %72 = sbr.rel (0) target = $region21
    $region20: #{tpu_custom_call.1} parent=1 // pred_region
      %74 = vsyncadd [#allocation9], 0
      %s76 = sshll.u32 %s4, 4
      %s77 = int_to_ptr.hbm [resolvable:$true] %s76
      %s78 = sshll.u32 [#allocation10], 4
      %s79 = int_to_ptr.vmem [resolvable:$true] %s78
      %81 = dma.hbm_to_vmem [thread:$0]  %s77, 64, %s79, [#allocation9]
    $region21: #{tpu_custom_call.1} parent=1 // pred_fallthru
      _
    // Predicated region
    $region22: #{tpu_custom_call.1} parent=1 // pred_check
      _
    $region23: #{tpu_custom_call.1} parent=1 // pred_check_branch
      %83 = sbr.rel (0) target = $region25
    $region24: #{tpu_custom_call.1} parent=1 // pred_region
      %85 = vsyncadd [#allocation12], 0
      %s86 = sshll.u32 %s5, 4
      %s87 = int_to_ptr.hbm [resolvable:$true] %s86
      %s88 = sshll.u32 [#allocation11], 4
      %s89 = int_to_ptr.vmem [resolvable:$true] %s88
      %94 = dma.hbm_to_vmem [thread:$0]  %s87, 1024, %s89, [#allocation12], 64, 64, 4
    $region25: #{tpu_custom_call.1} parent=1 // pred_fallthru
      _
    // Predicated region
    $region26: #{tpu_custom_call.1} parent=1 // pred_check
      _
    $region27: #{tpu_custom_call.1} parent=1 // pred_check_branch
      %96 = sbr.rel (0) target = $region29
    $region28: #{tpu_custom_call.1} parent=1 // pred_region
      _
    $region29: #{tpu_custom_call.1} parent=1 // pred_fallthru
      _
    // Predicated region
    $region30: #{tpu_custom_call.1} parent=1 // pred_check
      _
    $region31: #{tpu_custom_call.1} parent=1 // pred_check_branch
      %98 = sbr.rel (0) target = $region33
    $region32: #{tpu_custom_call.1} parent=1 // pred_region
      %100 = vsyncadd [#allocation12], 0
      %s101 = sshll.u32 %s7, 4
      %s102 = int_to_ptr.hbm [resolvable:$true] %s101
      %s103 = sshll.u32 [#allocation13], 4
      %s104 = int_to_ptr.vmem [resolvable:$true] %s103
      %109 = dma.hbm_to_vmem [thread:$0]  %s102, 1024, %s104, [#allocation12], 64, 64, 4
    $region33: #{tpu_custom_call.1} parent=1 // pred_fallthru
      _
    // Predicated region
    $region34: #{tpu_custom_call.1} parent=1 // pred_check
      _
    $region35: #{tpu_custom_call.1} parent=1 // pred_check_branch
      %111 = sbr.rel (0) target = $region37
    $region36: #{tpu_custom_call.1} parent=1 // pred_region
      _
    $region37: #{tpu_custom_call.1} parent=1 // pred_fallthru
      _
    // Predicated region
    $region38: #{tpu_custom_call.1} parent=1 // pred_check
      _
    $region39: #{tpu_custom_call.1} parent=1 // pred_check_branch
      %113 = sbr.rel (0) target = $region41
    $region40: #{tpu_custom_call.1} parent=1 // pred_region
      %115 = dma.done [#allocation3], 1024
    $region41: #{tpu_custom_call.1} parent=1 // pred_fallthru
      _
    // Predicated region
    $region42: #{tpu_custom_call.1} parent=1 // pred_check
      _
    $region43: #{tpu_custom_call.1} parent=1 // pred_check_branch
      %117 = sbr.rel (0) target = $region45
    $region44: #{tpu_custom_call.1} parent=1 // pred_region
      %119 = dma.done [#allocation6], 1024
    $region45: #{tpu_custom_call.1} parent=1 // pred_fallthru
      _
    // Predicated region
    $region46: #{tpu_custom_call.1} parent=1 // pred_check
      _
    $region47: #{tpu_custom_call.1} parent=1 // pred_check_branch
      %121 = sbr.rel (0) target = $region49
    $region48: #{tpu_custom_call.1} parent=1 // pred_region
      %123 = dma.done [#allocation6], 3072
    $region49: #{tpu_custom_call.1} parent=1 // pred_fallthru
      _
    // Predicated region
    $region50: #{tpu_custom_call.1} parent=1 // pred_check
      _
    $region51: #{tpu_custom_call.1} parent=1 // pred_check_branch
      %125 = sbr.rel (0) target = $region53
    $region52: #{tpu_custom_call.1} parent=1 // pred_region
      %127 = dma.done [#allocation9], 48
    $region53: #{tpu_custom_call.1} parent=1 // pred_fallthru
      _
    // Predicated region
    $region54: #{tpu_custom_call.1} parent=1 // pred_check
      _
    $region55: #{tpu_custom_call.1} parent=1 // pred_check_branch
      %129 = sbr.rel (0) target = $region57
    $region56: #{tpu_custom_call.1} parent=1 // pred_region
      %131 = dma.done [#allocation9], 64
    $region57: #{tpu_custom_call.1} parent=1 // pred_fallthru
      _
    // Predicated region
    $region58: #{tpu_custom_call.1} parent=1 // pred_check
      _
    $region59: #{tpu_custom_call.1} parent=1 // pred_check_branch
      %133 = sbr.rel (0) target = $region61
    $region60: #{tpu_custom_call.1} parent=1 // pred_region
      %135 = dma.done [#allocation12], 1024
    $region61: #{tpu_custom_call.1} parent=1 // pred_fallthru
      _
    // Predicated region
    $region62: #{tpu_custom_call.1} parent=1 // pred_check
      _
    $region63: #{tpu_custom_call.1} parent=1 // pred_check_branch
      %137 = sbr.rel (0) target = $region65
    $region64: #{tpu_custom_call.1} parent=1 // pred_region
      %139 = dma.done [#allocation12], 1024
    $region65: #{tpu_custom_call.1} parent=1 // pred_fallthru
      _
    %v140 = vld [vmem:[#allocation2] sm:$0xf]
    %v141 = vld [vmem:[#allocation2 + $0x4] sm:$0xf]
    %v142 = vld [vmem:[#allocation2 + $0x8] sm:$0xf]
    %v143 = vld [vmem:[#allocation2 + $0xc] sm:$0xf]
    %v144 = vld [vmem:[#allocation2 + $0x10] sm:$0xf]
    %v145 = vld [vmem:[#allocation2 + $0x14] sm:$0xf]
    %v146 = vld [vmem:[#allocation2 + $0x18] sm:$0xf]
    %v147 = vld [vmem:[#allocation2 + $0x1c] sm:$0xf]
    %v148 = vld [vmem:[#allocation2 + $0x20] sm:$0xf]
    %v149 = vld [vmem:[#allocation2 + $0x24] sm:$0xf]
    %v150 = vld [vmem:[#allocation2 + $0x28] sm:$0xf]
    %v151 = vld [vmem:[#allocation2 + $0x2c] sm:$0xf]
    %v152 = vld [vmem:[#allocation2 + $0x30] sm:$0xf]
    %v153 = vld [vmem:[#allocation2 + $0x34] sm:$0xf]
    %v154 = vld [vmem:[#allocation2 + $0x38] sm:$0xf]
    %v155 = vld [vmem:[#allocation2 + $0x3c] sm:$0xf]
    %v156 = vld [vmem:[#allocation5] sm:$0xf]
    %v157 = vld [vmem:[#allocation5 + $0x4] sm:$0xf]
    %v158 = vld [vmem:[#allocation5 + $0x8] sm:$0xf]
    %v159 = vld [vmem:[#allocation5 + $0xc] sm:$0xf]
    %v160 = vld [vmem:[#allocation5 + $0x10] sm:$0xf]
    %v161 = vld [vmem:[#allocation5 + $0x14] sm:$0xf]
    %v162 = vld [vmem:[#allocation5 + $0x18] sm:$0xf]
    %v163 = vld [vmem:[#allocation5 + $0x1c] sm:$0xf]
    %v164 = vld [vmem:[#allocation5 + $0x20] sm:$0xf]
    %v165 = vld [vmem:[#allocation5 + $0x24] sm:$0xf]
    %v166 = vld [vmem:[#allocation5 + $0x28] sm:$0xf]
    %v167 = vld [vmem:[#allocation5 + $0x2c] sm:$0xf]
    %v168 = vld [vmem:[#allocation5 + $0x30] sm:$0xf]
    %v169 = vld [vmem:[#allocation5 + $0x34] sm:$0xf]
    %v170 = vld [vmem:[#allocation5 + $0x38] sm:$0xf]
    %v171 = vld [vmem:[#allocation5 + $0x3c] sm:$0xf]
    %v172 = vld [vmem:[#allocation7] sm:$0xf]
    %v173 = vld [vmem:[#allocation7 + $0x4] sm:$0xf]
    %v174 = vld [vmem:[#allocation7 + $0x8] sm:$0xf]
    %v175 = vld [vmem:[#allocation7 + $0xc] sm:$0xf]
    %v176 = vld [vmem:[#allocation7 + $0x10] sm:$0xf]
    %v177 = vld [vmem:[#allocation7 + $0x14] sm:$0xf]
    %v178 = vld [vmem:[#allocation7 + $0x18] sm:$0xf]
    %v179 = vld [vmem:[#allocation7 + $0x1c] sm:$0xf]
    %v180 = vld [vmem:[#allocation7 + $0x20] sm:$0xf]
    %v181 = vld [vmem:[#allocation7 + $0x24] sm:$0xf]
    %v182 = vld [vmem:[#allocation7 + $0x28] sm:$0xf]
    %v183 = vld [vmem:[#allocation7 + $0x2c] sm:$0xf]
    %v184 = vld [vmem:[#allocation7 + $0x30] sm:$0xf]
    %v185 = vld [vmem:[#allocation7 + $0x34] sm:$0xf]
    %v186 = vld [vmem:[#allocation7 + $0x38] sm:$0xf]
    %v187 = vld [vmem:[#allocation7 + $0x3c] sm:$0xf]
    %v204 = vunpack.c.l.b16 %v156
    %v205 = vunpack.c.l.b16 %v157
    %v206 = vunpack.c.l.b16 %v158
    %v207 = vunpack.c.l.b16 %v159
    %v208 = vunpack.c.l.b16 %v160
    %v209 = vunpack.c.l.b16 %v161
    %v210 = vunpack.c.l.b16 %v162
    %v211 = vunpack.c.l.b16 %v163
    %v212 = vunpack.c.l.b16 %v164
    %v213 = vunpack.c.l.b16 %v165
    %v214 = vunpack.c.l.b16 %v166
    %v215 = vunpack.c.l.b16 %v167
    %v216 = vunpack.c.l.b16 %v168
    %v217 = vunpack.c.l.b16 %v169
    %v218 = vunpack.c.l.b16 %v170
    %v219 = vunpack.c.l.b16 %v171
    %v220 = vpack.c.b16 %v205, %v204
    %v221 = vpack.c.b16 %v207, %v206
    %v222 = vpack.c.b16 %v209, %v208
    %v223 = vpack.c.b16 %v211, %v210
    %v224 = vpack.c.b16 %v213, %v212
    %v225 = vpack.c.b16 %v215, %v214
    %v226 = vpack.c.b16 %v217, %v216
    %v227 = vpack.c.b16 %v219, %v218
    %v252 = vunpack.c.l.b16 %v172
    %v253 = vunpack.c.l.b16 %v173
    %v254 = vunpack.c.l.b16 %v174
    %v255 = vunpack.c.l.b16 %v175
    %v256 = vunpack.c.l.b16 %v176
    %v257 = vunpack.c.l.b16 %v177
    %v258 = vunpack.c.l.b16 %v178
    %v259 = vunpack.c.l.b16 %v179
    %v260 = vunpack.c.l.b16 %v180
    %v261 = vunpack.c.l.b16 %v181
    %v262 = vunpack.c.l.b16 %v182
    %v263 = vunpack.c.l.b16 %v183
    %v264 = vunpack.c.l.b16 %v184
    %v265 = vunpack.c.l.b16 %v185
    %v266 = vunpack.c.l.b16 %v186
    %v267 = vunpack.c.l.b16 %v187
    %v268 = vpack.c.b16 %v253, %v252
    %v269 = vpack.c.b16 %v255, %v254
    %v270 = vpack.c.b16 %v257, %v256
    %v271 = vpack.c.b16 %v259, %v258
    %v272 = vpack.c.b16 %v261, %v260
    %v273 = vpack.c.b16 %v263, %v262
    %v274 = vpack.c.b16 %v265, %v264
    %v275 = vpack.c.b16 %v267, %v266
    %284 = vmatpush.bf16.msra.mxu0 %v275
    %285 = vmatpush.bf16.msra.mxu0 %v274
    %286 = vmatpush.bf16.msra.mxu0 %v273
    %287 = vmatpush.bf16.msra.mxu0 %v272
    %288 = vmatpush.bf16.msra.mxu0 %v271
    %289 = vmatpush.bf16.msra.mxu0 %v270
    %290 = vmatpush.bf16.msra.mxu0 %v269
    %291 = vmatpush.bf16.msra.mxu0 %v268
    %292 = vmatmul.bf16.gmra.mxu0 %v220
    %v293 = vpop.f32.mrf.mxu0
    %v294 = vadd.f32 0.0, %v293
    %v295 = vpop.f32.mrf.mxu0
    %v296 = vadd.f32 0.0, %v295
    %297 = vmatmul.bf16.gmra.mxu0 %v221
    %v298 = vpop.f32.mrf.mxu0
    %v299 = vadd.f32 0.0, %v298
    %v300 = vpop.f32.mrf.mxu0
    %v301 = vadd.f32 0.0, %v300
    %302 = vmatmul.bf16.gmra.mxu0 %v222
    %v303 = vpop.f32.mrf.mxu0
    %v304 = vadd.f32 0.0, %v303
    %v305 = vpop.f32.mrf.mxu0
    %v306 = vadd.f32 0.0, %v305
    %307 = vmatmul.bf16.gmra.mxu0 %v223
    %v308 = vpop.f32.mrf.mxu0
    %v309 = vadd.f32 0.0, %v308
    %v310 = vpop.f32.mrf.mxu0
    %v311 = vadd.f32 0.0, %v310
    %312 = vmatmul.bf16.gmra.mxu0 %v224
    %v313 = vpop.f32.mrf.mxu0
    %v314 = vadd.f32 0.0, %v313
    %v315 = vpop.f32.mrf.mxu0
    %v316 = vadd.f32 0.0, %v315
    %317 = vmatmul.bf16.gmra.mxu0 %v225
    %v318 = vpop.f32.mrf.mxu0
    %v319 = vadd.f32 0.0, %v318
    %v320 = vpop.f32.mrf.mxu0
    %v321 = vadd.f32 0.0, %v320
    %322 = vmatmul.bf16.gmra.mxu0 %v226
    %v323 = vpop.f32.mrf.mxu0
    %v324 = vadd.f32 0.0, %v323
    %v325 = vpop.f32.mrf.mxu0
    %v326 = vadd.f32 0.0, %v325
    %327 = vmatmul.bf16.gmra.mxu0 %v227
    %v328 = vpop.f32.mrf.mxu0
    %v329 = vadd.f32 0.0, %v328
    %v330 = vpop.f32.mrf.mxu0
    %v331 = vadd.f32 0.0, %v330
    %332 = vdwg.mxu0
    %v333 = vpack.c.bf16 %v296, %v294
    %v334 = vpack.c.bf16 %v301, %v299
    %v335 = vpack.c.bf16 %v306, %v304
    %v336 = vpack.c.bf16 %v311, %v309
    %v337 = vpack.c.bf16 %v316, %v314
    %v338 = vpack.c.bf16 %v321, %v319
    %v339 = vpack.c.bf16 %v326, %v324
    %v340 = vpack.c.bf16 %v331, %v329
    %v341 = vld [vmem:[#allocation8] sm:$0x1]
    %v343 = vperm.slane %v341, 0
    %v361 = vunpack.c.l.b16 %v140
    %v362 = vunpack.c.l.b16 %v141
    %v363 = vunpack.c.l.b16 %v142
    %v364 = vunpack.c.l.b16 %v143
    %v365 = vunpack.c.l.b16 %v144
    %v366 = vunpack.c.l.b16 %v145
    %v367 = vunpack.c.l.b16 %v146
    %v368 = vunpack.c.l.b16 %v147
    %v369 = vunpack.c.l.b16 %v148
    %v370 = vunpack.c.l.b16 %v149
    %v371 = vunpack.c.l.b16 %v150
    %v372 = vunpack.c.l.b16 %v151
    %v373 = vunpack.c.l.b16 %v152
    %v374 = vunpack.c.l.b16 %v153
    %v375 = vunpack.c.l.b16 %v154
    %v376 = vunpack.c.l.b16 %v155
    %v377 = vpack.c.b16 %v362, %v361
    %v378 = vpack.c.b16 %v364, %v363
    %v379 = vpack.c.b16 %v366, %v365
    %v380 = vpack.c.b16 %v368, %v367
    %v381 = vpack.c.b16 %v370, %v369
    %v382 = vpack.c.b16 %v372, %v371
    %v383 = vpack.c.b16 %v374, %v373
    %v384 = vpack.c.b16 %v376, %v375
    %393 = vmatpush.bf16.msra.mxu0 %v340
    %394 = vmatpush.bf16.msra.mxu0 %v339
    %395 = vmatpush.bf16.msra.mxu0 %v338
    %396 = vmatpush.bf16.msra.mxu0 %v337
    %397 = vmatpush.bf16.msra.mxu0 %v336
    %398 = vmatpush.bf16.msra.mxu0 %v335
    %399 = vmatpush.bf16.msra.mxu0 %v334
    %400 = vmatpush.bf16.msra.mxu0 %v333
    %401 = vmatmul.bf16.gmra.mxu0 %v377
    %v402 = vpop.f32.mrf.mxu0
    %v403 = vadd.f32 %v343, %v402
    %v404 = vpop.f32.mrf.mxu0
    %v405 = vadd.f32 %v343, %v404
    %406 = vmatmul.bf16.gmra.mxu0 %v378
    %v407 = vpop.f32.mrf.mxu0
    %v408 = vadd.f32 %v343, %v407
    %v409 = vpop.f32.mrf.mxu0
    %v410 = vadd.f32 %v343, %v409
    %411 = vmatmul.bf16.gmra.mxu0 %v379
    %v412 = vpop.f32.mrf.mxu0
    %v413 = vadd.f32 %v343, %v412
    %v414 = vpop.f32.mrf.mxu0
    %v415 = vadd.f32 %v343, %v414
    %416 = vmatmul.bf16.gmra.mxu0 %v380
    %v417 = vpop.f32.mrf.mxu0
    %v418 = vadd.f32 %v343, %v417
    %v419 = vpop.f32.mrf.mxu0
    %v420 = vadd.f32 %v343, %v419
    %421 = vmatmul.bf16.gmra.mxu0 %v381
    %v422 = vpop.f32.mrf.mxu0
    %v423 = vadd.f32 %v343, %v422
    %v424 = vpop.f32.mrf.mxu0
    %v425 = vadd.f32 %v343, %v424
    %426 = vmatmul.bf16.gmra.mxu0 %v382
    %v427 = vpop.f32.mrf.mxu0
    %v428 = vadd.f32 %v343, %v427
    %v429 = vpop.f32.mrf.mxu0
    %v430 = vadd.f32 %v343, %v429
    %431 = vmatmul.bf16.gmra.mxu0 %v383
    %v432 = vpop.f32.mrf.mxu0
    %v433 = vadd.f32 %v343, %v432
    %v434 = vpop.f32.mrf.mxu0
    %v435 = vadd.f32 %v343, %v434
    %436 = vmatmul.bf16.gmra.mxu0 %v384
    %v437 = vpop.f32.mrf.mxu0
    %v438 = vadd.f32 %v343, %v437
    %v439 = vpop.f32.mrf.mxu0
    %v440 = vadd.f32 %v343, %v439
    %441 = vdwg.mxu0
    %v442 = vmax.f32 %v403, 0.0
    %v443 = vmax.f32 %v405, 0.0
    %v444 = vmax.f32 %v408, 0.0
    %v445 = vmax.f32 %v410, 0.0
    %v446 = vmax.f32 %v413, 0.0
    %v447 = vmax.f32 %v415, 0.0
    %v448 = vmax.f32 %v418, 0.0
    %v449 = vmax.f32 %v420, 0.0
    %v450 = vmax.f32 %v423, 0.0
    %v451 = vmax.f32 %v425, 0.0
    %v452 = vmax.f32 %v428, 0.0
    %v453 = vmax.f32 %v430, 0.0
    %v454 = vmax.f32 %v433, 0.0
    %v455 = vmax.f32 %v435, 0.0
    %v456 = vmax.f32 %v438, 0.0
    %v457 = vmax.f32 %v440, 0.0
    %v458 = vpack.c.bf16 %v443, %v442
    %v459 = vpack.c.bf16 %v445, %v444
    %v460 = vpack.c.bf16 %v447, %v446
    %v461 = vpack.c.bf16 %v449, %v448
    %v462 = vpack.c.bf16 %v451, %v450
    %v463 = vpack.c.bf16 %v453, %v452
    %v464 = vpack.c.bf16 %v455, %v454
    %v465 = vpack.c.bf16 %v457, %v456
    %s466 = scalar_lea.vmem [#allocation7], 64
    %v467 = vld [vmem:[%s466] sm:$0xf]
    %v468 = vld [vmem:[%s466 + $0x4] sm:$0xf]
    %v469 = vld [vmem:[%s466 + $0x8] sm:$0xf]
    %v470 = vld [vmem:[%s466 + $0xc] sm:$0xf]
    %v471 = vld [vmem:[%s466 + $0x10] sm:$0xf]
    %v472 = vld [vmem:[%s466 + $0x14] sm:$0xf]
    %v473 = vld [vmem:[%s466 + $0x18] sm:$0xf]
    %v474 = vld [vmem:[%s466 + $0x1c] sm:$0xf]
    %v475 = vld [vmem:[%s466 + $0x20] sm:$0xf]
    %v476 = vld [vmem:[%s466 + $0x24] sm:$0xf]
    %v477 = vld [vmem:[%s466 + $0x28] sm:$0xf]
    %v478 = vld [vmem:[%s466 + $0x2c] sm:$0xf]
    %v479 = vld [vmem:[%s466 + $0x30] sm:$0xf]
    %v480 = vld [vmem:[%s466 + $0x34] sm:$0xf]
    %v481 = vld [vmem:[%s466 + $0x38] sm:$0xf]
    %v482 = vld [vmem:[%s466 + $0x3c] sm:$0xf]
    %v499 = vunpack.c.l.b16 %v467
    %v500 = vunpack.c.l.b16 %v468
    %v501 = vunpack.c.l.b16 %v469
    %v502 = vunpack.c.l.b16 %v470
    %v503 = vunpack.c.l.b16 %v471
    %v504 = vunpack.c.l.b16 %v472
    %v505 = vunpack.c.l.b16 %v473
    %v506 = vunpack.c.l.b16 %v474
    %v507 = vunpack.c.l.b16 %v475
    %v508 = vunpack.c.l.b16 %v476
    %v509 = vunpack.c.l.b16 %v477
    %v510 = vunpack.c.l.b16 %v478
    %v511 = vunpack.c.l.b16 %v479
    %v512 = vunpack.c.l.b16 %v480
    %v513 = vunpack.c.l.b16 %v481
    %v514 = vunpack.c.l.b16 %v482
    %v515 = vpack.c.b16 %v500, %v499
    %v516 = vpack.c.b16 %v502, %v501
    %v517 = vpack.c.b16 %v504, %v503
    %v518 = vpack.c.b16 %v506, %v505
    %v519 = vpack.c.b16 %v508, %v507
    %v520 = vpack.c.b16 %v510, %v509
    %v521 = vpack.c.b16 %v512, %v511
    %v522 = vpack.c.b16 %v514, %v513
    %531 = vmatpush.bf16.msra.mxu0 %v522
    %532 = vmatpush.bf16.msra.mxu0 %v521
    %533 = vmatpush.bf16.msra.mxu0 %v520
    %534 = vmatpush.bf16.msra.mxu0 %v519
    %535 = vmatpush.bf16.msra.mxu0 %v518
    %536 = vmatpush.bf16.msra.mxu0 %v517
    %537 = vmatpush.bf16.msra.mxu0 %v516
    %538 = vmatpush.bf16.msra.mxu0 %v515
    %539 = vmatmul.bf16.gmra.mxu0 %v458
    %v540 = vpop.f32.mrf.mxu0
    %v541 = vadd.f32 0.0, %v540
    %v542 = vpop.f32.mrf.mxu0
    %v543 = vadd.f32 0.0, %v542
    %544 = vmatmul.bf16.gmra.mxu0 %v459
    %v545 = vpop.f32.mrf.mxu0
    %v546 = vadd.f32 0.0, %v545
    %v547 = vpop.f32.mrf.mxu0
    %v548 = vadd.f32 0.0, %v547
    %549 = vmatmul.bf16.gmra.mxu0 %v460
    %v550 = vpop.f32.mrf.mxu0
    %v551 = vadd.f32 0.0, %v550
    %v552 = vpop.f32.mrf.mxu0
    %v553 = vadd.f32 0.0, %v552
    %554 = vmatmul.bf16.gmra.mxu0 %v461
    %v555 = vpop.f32.mrf.mxu0
    %v556 = vadd.f32 0.0, %v555
    %v557 = vpop.f32.mrf.mxu0
    %v558 = vadd.f32 0.0, %v557
    %559 = vmatmul.bf16.gmra.mxu0 %v462
    %v560 = vpop.f32.mrf.mxu0
    %v561 = vadd.f32 0.0, %v560
    %v562 = vpop.f32.mrf.mxu0
    %v563 = vadd.f32 0.0, %v562
    %564 = vmatmul.bf16.gmra.mxu0 %v463
    %v565 = vpop.f32.mrf.mxu0
    %v566 = vadd.f32 0.0, %v565
    %v567 = vpop.f32.mrf.mxu0
    %v568 = vadd.f32 0.0, %v567
    %569 = vmatmul.bf16.gmra.mxu0 %v464
    %v570 = vpop.f32.mrf.mxu0
    %v571 = vadd.f32 0.0, %v570
    %v572 = vpop.f32.mrf.mxu0
    %v573 = vadd.f32 0.0, %v572
    %574 = vmatmul.bf16.gmra.mxu0 %v465
    %v575 = vpop.f32.mrf.mxu0
    %v576 = vadd.f32 0.0, %v575
    %v577 = vpop.f32.mrf.mxu0
    %v578 = vadd.f32 0.0, %v577
    %579 = vdwg.mxu0
    %v580 = vpack.c.bf16 %v543, %v541
    %v581 = vpack.c.bf16 %v548, %v546
    %v582 = vpack.c.bf16 %v553, %v551
    %v583 = vpack.c.bf16 %v558, %v556
    %v584 = vpack.c.bf16 %v563, %v561
    %v585 = vpack.c.bf16 %v568, %v566
    %v586 = vpack.c.bf16 %v573, %v571
    %v587 = vpack.c.bf16 %v578, %v576
    %s588 = scalar_lea.vmem [#allocation8], 1
    %v589 = vld [vmem:[%s588] sm:$0x1]
    %v591 = vperm.slane %v589, 0
    %593 = vmatpush.bf16.msra.mxu0 %v587
    %594 = vmatpush.bf16.msra.mxu0 %v586
    %595 = vmatpush.bf16.msra.mxu0 %v585
    %596 = vmatpush.bf16.msra.mxu0 %v584
    %597 = vmatpush.bf16.msra.mxu0 %v583
    %598 = vmatpush.bf16.msra.mxu0 %v582
    %599 = vmatpush.bf16.msra.mxu0 %v581
    %600 = vmatpush.bf16.msra.mxu0 %v580
    %601 = vmatmul.bf16.gmra.mxu0 %v377
    %v602 = vpop.f32.mrf.mxu0
    %v603 = vadd.f32 %v591, %v602
    %v604 = vpop.f32.mrf.mxu0
    %v605 = vadd.f32 %v591, %v604
    %606 = vmatmul.bf16.gmra.mxu0 %v378
    %v607 = vpop.f32.mrf.mxu0
    %v608 = vadd.f32 %v591, %v607
    %v609 = vpop.f32.mrf.mxu0
    %v610 = vadd.f32 %v591, %v609
    %611 = vmatmul.bf16.gmra.mxu0 %v379
    %v612 = vpop.f32.mrf.mxu0
    %v613 = vadd.f32 %v591, %v612
    %v614 = vpop.f32.mrf.mxu0
    %v615 = vadd.f32 %v591, %v614
    %616 = vmatmul.bf16.gmra.mxu0 %v380
    %v617 = vpop.f32.mrf.mxu0
    %v618 = vadd.f32 %v591, %v617
    %v619 = vpop.f32.mrf.mxu0
    %v620 = vadd.f32 %v591, %v619
    %621 = vmatmul.bf16.gmra.mxu0 %v381
    %v622 = vpop.f32.mrf.mxu0
    %v623 = vadd.f32 %v591, %v622
    %v624 = vpop.f32.mrf.mxu0
    %v625 = vadd.f32 %v591, %v624
    %626 = vmatmul.bf16.gmra.mxu0 %v382
    %v627 = vpop.f32.mrf.mxu0
    %v628 = vadd.f32 %v591, %v627
    %v629 = vpop.f32.mrf.mxu0
    %v630 = vadd.f32 %v591, %v629
    %631 = vmatmul.bf16.gmra.mxu0 %v383
    %v632 = vpop.f32.mrf.mxu0
    %v633 = vadd.f32 %v591, %v632
    %v634 = vpop.f32.mrf.mxu0
    %v635 = vadd.f32 %v591, %v634
    %636 = vmatmul.bf16.gmra.mxu0 %v384
    %v637 = vpop.f32.mrf.mxu0
    %v638 = vadd.f32 %v591, %v637
    %v639 = vpop.f32.mrf.mxu0
    %v640 = vadd.f32 %v591, %v639
    %641 = vdwg.mxu0
    %v642 = vmax.f32 %v603, 0.0
    %v643 = vmax.f32 %v605, 0.0
    %v644 = vmax.f32 %v608, 0.0
    %v645 = vmax.f32 %v610, 0.0
    %v646 = vmax.f32 %v613, 0.0
    %v647 = vmax.f32 %v615, 0.0
    %v648 = vmax.f32 %v618, 0.0
    %v649 = vmax.f32 %v620, 0.0
    %v650 = vmax.f32 %v623, 0.0
    %v651 = vmax.f32 %v625, 0.0
    %v652 = vmax.f32 %v628, 0.0
    %v653 = vmax.f32 %v630, 0.0
    %v654 = vmax.f32 %v633, 0.0
    %v655 = vmax.f32 %v635, 0.0
    %v656 = vmax.f32 %v638, 0.0
    %v657 = vmax.f32 %v640, 0.0
    %v658 = vpack.c.bf16 %v643, %v642
    %v659 = vpack.c.bf16 %v645, %v644
    %v660 = vpack.c.bf16 %v647, %v646
    %v661 = vpack.c.bf16 %v649, %v648
    %v662 = vpack.c.bf16 %v651, %v650
    %v663 = vpack.c.bf16 %v653, %v652
    %v664 = vpack.c.bf16 %v655, %v654
    %v665 = vpack.c.bf16 %v657, %v656
    %s666 = scalar_lea.vmem [#allocation7], 128
    %v667 = vld [vmem:[%s666] sm:$0xf]
    %v668 = vld [vmem:[%s666 + $0x4] sm:$0xf]
    %v669 = vld [vmem:[%s666 + $0x8] sm:$0xf]
    %v670 = vld [vmem:[%s666 + $0xc] sm:$0xf]
    %v671 = vld [vmem:[%s666 + $0x10] sm:$0xf]
    %v672 = vld [vmem:[%s666 + $0x14] sm:$0xf]
    %v673 = vld [vmem:[%s666 + $0x18] sm:$0xf]
    %v674 = vld [vmem:[%s666 + $0x1c] sm:$0xf]
    %v675 = vld [vmem:[%s666 + $0x20] sm:$0xf]
    %v676 = vld [vmem:[%s666 + $0x24] sm:$0xf]
    %v677 = vld [vmem:[%s666 + $0x28] sm:$0xf]
    %v678 = vld [vmem:[%s666 + $0x2c] sm:$0xf]
    %v679 = vld [vmem:[%s666 + $0x30] sm:$0xf]
    %v680 = vld [vmem:[%s666 + $0x34] sm:$0xf]
    %v681 = vld [vmem:[%s666 + $0x38] sm:$0xf]
    %v682 = vld [vmem:[%s666 + $0x3c] sm:$0xf]
    %v699 = vunpack.c.l.b16 %v667
    %v700 = vunpack.c.l.b16 %v668
    %v701 = vunpack.c.l.b16 %v669
    %v702 = vunpack.c.l.b16 %v670
    %v703 = vunpack.c.l.b16 %v671
    %v704 = vunpack.c.l.b16 %v672
    %v705 = vunpack.c.l.b16 %v673
    %v706 = vunpack.c.l.b16 %v674
    %v707 = vunpack.c.l.b16 %v675
    %v708 = vunpack.c.l.b16 %v676
    %v709 = vunpack.c.l.b16 %v677
    %v710 = vunpack.c.l.b16 %v678
    %v711 = vunpack.c.l.b16 %v679
    %v712 = vunpack.c.l.b16 %v680
    %v713 = vunpack.c.l.b16 %v681
    %v714 = vunpack.c.l.b16 %v682
    %v715 = vpack.c.b16 %v700, %v699
    %v716 = vpack.c.b16 %v702, %v701
    %v717 = vpack.c.b16 %v704, %v703
    %v718 = vpack.c.b16 %v706, %v705
    %v719 = vpack.c.b16 %v708, %v707
    %v720 = vpack.c.b16 %v710, %v709
    %v721 = vpack.c.b16 %v712, %v711
    %v722 = vpack.c.b16 %v714, %v713
    %731 = vmatpush.bf16.msra.mxu0 %v722
    %732 = vmatpush.bf16.msra.mxu0 %v721
    %733 = vmatpush.bf16.msra.mxu0 %v720
    %734 = vmatpush.bf16.msra.mxu0 %v719
    %735 = vmatpush.bf16.msra.mxu0 %v718
    %736 = vmatpush.bf16.msra.mxu0 %v717
    %737 = vmatpush.bf16.msra.mxu0 %v716
    %738 = vmatpush.bf16.msra.mxu0 %v715
    %739 = vmatmul.bf16.gmra.mxu0 %v658
    %v740 = vpop.f32.mrf.mxu0
    %v741 = vadd.f32 0.0, %v740
    %v742 = vpop.f32.mrf.mxu0
    %v743 = vadd.f32 0.0, %v742
    %744 = vmatmul.bf16.gmra.mxu0 %v659
    %v745 = vpop.f32.mrf.mxu0
    %v746 = vadd.f32 0.0, %v745
    %v747 = vpop.f32.mrf.mxu0
    %v748 = vadd.f32 0.0, %v747
    %749 = vmatmul.bf16.gmra.mxu0 %v660
    %v750 = vpop.f32.mrf.mxu0
    %v751 = vadd.f32 0.0, %v750
    %v752 = vpop.f32.mrf.mxu0
    %v753 = vadd.f32 0.0, %v752
    %754 = vmatmul.bf16.gmra.mxu0 %v661
    %v755 = vpop.f32.mrf.mxu0
    %v756 = vadd.f32 0.0, %v755
    %v757 = vpop.f32.mrf.mxu0
    %v758 = vadd.f32 0.0, %v757
    %759 = vmatmul.bf16.gmra.mxu0 %v662
    %v760 = vpop.f32.mrf.mxu0
    %v761 = vadd.f32 0.0, %v760
    %v762 = vpop.f32.mrf.mxu0
    %v763 = vadd.f32 0.0, %v762
    %764 = vmatmul.bf16.gmra.mxu0 %v663
    %v765 = vpop.f32.mrf.mxu0
    %v766 = vadd.f32 0.0, %v765
    %v767 = vpop.f32.mrf.mxu0
    %v768 = vadd.f32 0.0, %v767
    %769 = vmatmul.bf16.gmra.mxu0 %v664
    %v770 = vpop.f32.mrf.mxu0
    %v771 = vadd.f32 0.0, %v770
    %v772 = vpop.f32.mrf.mxu0
    %v773 = vadd.f32 0.0, %v772
    %774 = vmatmul.bf16.gmra.mxu0 %v665
    %v775 = vpop.f32.mrf.mxu0
    %v776 = vadd.f32 0.0, %v775
    %v777 = vpop.f32.mrf.mxu0
    %v778 = vadd.f32 0.0, %v777
    %779 = vdwg.mxu0
    %v780 = vpack.c.bf16 %v743, %v741
    %v781 = vpack.c.bf16 %v748, %v746
    %v782 = vpack.c.bf16 %v753, %v751
    %v783 = vpack.c.bf16 %v758, %v756
    %v784 = vpack.c.bf16 %v763, %v761
    %v785 = vpack.c.bf16 %v768, %v766
    %v786 = vpack.c.bf16 %v773, %v771
    %v787 = vpack.c.bf16 %v778, %v776
    %s788 = scalar_lea.vmem [#allocation8], 2
    %v789 = vld [vmem:[%s788] sm:$0x1]
    %v791 = vperm.slane %v789, 0
    %793 = vmatpush.bf16.msra.mxu0 %v787
    %794 = vmatpush.bf16.msra.mxu0 %v786
    %795 = vmatpush.bf16.msra.mxu0 %v785
    %796 = vmatpush.bf16.msra.mxu0 %v784
    %797 = vmatpush.bf16.msra.mxu0 %v783
    %798 = vmatpush.bf16.msra.mxu0 %v782
    %799 = vmatpush.bf16.msra.mxu0 %v781
    %800 = vmatpush.bf16.msra.mxu0 %v780
    %801 = vmatmul.bf16.gmra.mxu0 %v377
    %v802 = vpop.f32.mrf.mxu0
    %v803 = vadd.f32 %v791, %v802
    %v804 = vpop.f32.mrf.mxu0
    %v805 = vadd.f32 %v791, %v804
    %806 = vmatmul.bf16.gmra.mxu0 %v378
    %v807 = vpop.f32.mrf.mxu0
    %v808 = vadd.f32 %v791, %v807
    %v809 = vpop.f32.mrf.mxu0
    %v810 = vadd.f32 %v791, %v809
    %811 = vmatmul.bf16.gmra.mxu0 %v379
    %v812 = vpop.f32.mrf.mxu0
    %v813 = vadd.f32 %v791, %v812
    %v814 = vpop.f32.mrf.mxu0
    %v815 = vadd.f32 %v791, %v814
    %816 = vmatmul.bf16.gmra.mxu0 %v380
    %v817 = vpop.f32.mrf.mxu0
    %v818 = vadd.f32 %v791, %v817
    %v819 = vpop.f32.mrf.mxu0
    %v820 = vadd.f32 %v791, %v819
    %821 = vmatmul.bf16.gmra.mxu0 %v381
    %v822 = vpop.f32.mrf.mxu0
    %v823 = vadd.f32 %v791, %v822
    %v824 = vpop.f32.mrf.mxu0
    %v825 = vadd.f32 %v791, %v824
    %826 = vmatmul.bf16.gmra.mxu0 %v382
    %v827 = vpop.f32.mrf.mxu0
    %v828 = vadd.f32 %v791, %v827
    %v829 = vpop.f32.mrf.mxu0
    %v830 = vadd.f32 %v791, %v829
    %831 = vmatmul.bf16.gmra.mxu0 %v383
    %v832 = vpop.f32.mrf.mxu0
    %v833 = vadd.f32 %v791, %v832
    %v834 = vpop.f32.mrf.mxu0
    %v835 = vadd.f32 %v791, %v834
    %836 = vmatmul.bf16.gmra.mxu0 %v384
    %v837 = vpop.f32.mrf.mxu0
    %v838 = vadd.f32 %v791, %v837
    %v839 = vpop.f32.mrf.mxu0
    %v840 = vadd.f32 %v791, %v839
    %841 = vdwg.mxu0
    %v842 = vld [vmem:[#allocation10] sm:$0xf]
    %v843 = vpack.c.bf16 %v805, %v803
    %v844 = vpack.c.bf16 %v810, %v808
    %v845 = vpack.c.bf16 %v815, %v813
    %v846 = vpack.c.bf16 %v820, %v818
    %v847 = vpack.c.bf16 %v825, %v823
    %v848 = vpack.c.bf16 %v830, %v828
    %v849 = vpack.c.bf16 %v835, %v833
    %v850 = vpack.c.bf16 %v840, %v838
    %851 = vmatpush.bf16.msra.mxu0 %v850
    %852 = vmatpush.bf16.msra.mxu0 %v849
    %853 = vmatpush.bf16.msra.mxu0 %v848
    %854 = vmatpush.bf16.msra.mxu0 %v847
    %855 = vmatpush.bf16.msra.mxu0 %v846
    %856 = vmatpush.bf16.msra.mxu0 %v845
    %857 = vmatpush.bf16.msra.mxu0 %v844
    %858 = vmatpush.bf16.msra.mxu0 %v843
    %859 = vmatmul.bf16.gmra.mxu0 %v842
    %v860 = vpop.f32.mrf.mxu0
    %v861 = vadd.f32 0.0, %v860
    %v862 = vpop.f32.mrf.mxu0
    %863 = vdwg.mxu0
    %v864 = vpack.c.bf16 %v861, %v861
    %v865 = vld [vmem:[#allocation11] sm:$0xf]
    %v866 = vld [vmem:[#allocation11 + $0x4] sm:$0xf]
    %v867 = vld [vmem:[#allocation11 + $0x8] sm:$0xf]
    %v868 = vld [vmem:[#allocation11 + $0xc] sm:$0xf]
    %v869 = vld [vmem:[#allocation11 + $0x10] sm:$0xf]
    %v870 = vld [vmem:[#allocation11 + $0x14] sm:$0xf]
    %v871 = vld [vmem:[#allocation11 + $0x18] sm:$0xf]
    %v872 = vld [vmem:[#allocation11 + $0x1c] sm:$0xf]
    %v873 = vld [vmem:[#allocation11 + $0x20] sm:$0xf]
    %v874 = vld [vmem:[#allocation11 + $0x24] sm:$0xf]
    %v875 = vld [vmem:[#allocation11 + $0x28] sm:$0xf]
    %v876 = vld [vmem:[#allocation11 + $0x2c] sm:$0xf]
    %v877 = vld [vmem:[#allocation11 + $0x30] sm:$0xf]
    %v878 = vld [vmem:[#allocation11 + $0x34] sm:$0xf]
    %v879 = vld [vmem:[#allocation11 + $0x38] sm:$0xf]
    %v880 = vld [vmem:[#allocation11 + $0x3c] sm:$0xf]
    %v881 = vld [vmem:[%s6] sm:$0x1]
    %v883 = vperm.slane %v881, 0
    %v901 = vunpack.c.l.b16 %v865
    %v902 = vunpack.c.l.b16 %v866
    %v903 = vunpack.c.l.b16 %v867
    %v904 = vunpack.c.l.b16 %v868
    %v905 = vunpack.c.l.b16 %v869
    %v906 = vunpack.c.l.b16 %v870
    %v907 = vunpack.c.l.b16 %v871
    %v908 = vunpack.c.l.b16 %v872
    %v909 = vunpack.c.l.b16 %v873
    %v910 = vunpack.c.l.b16 %v874
    %v911 = vunpack.c.l.b16 %v875
    %v912 = vunpack.c.l.b16 %v876
    %v913 = vunpack.c.l.b16 %v877
    %v914 = vunpack.c.l.b16 %v878
    %v915 = vunpack.c.l.b16 %v879
    %v916 = vunpack.c.l.b16 %v880
    %v917 = vpack.c.b16 %v902, %v901
    %v918 = vpack.c.b16 %v904, %v903
    %v919 = vpack.c.b16 %v906, %v905
    %v920 = vpack.c.b16 %v908, %v907
    %v921 = vpack.c.b16 %v910, %v909
    %v922 = vpack.c.b16 %v912, %v911
    %v923 = vpack.c.b16 %v914, %v913
    %v924 = vpack.c.b16 %v916, %v915
    %933 = vmatpush.bf16.msra.mxu0 %v924
    %934 = vmatpush.bf16.msra.mxu0 %v923
    %935 = vmatpush.bf16.msra.mxu0 %v922
    %936 = vmatpush.bf16.msra.mxu0 %v921
    %937 = vmatpush.bf16.msra.mxu0 %v920
    %938 = vmatpush.bf16.msra.mxu0 %v919
    %939 = vmatpush.bf16.msra.mxu0 %v918
    %940 = vmatpush.bf16.msra.mxu0 %v917
    %941 = vmatmul.bf16.gmra.mxu0 %v864
    %v942 = vpop.f32.mrf.mxu0
    %v943 = vadd.f32 %v883, %v942
    %v944 = vpop.f32.mrf.mxu0
    %945 = vdwg.mxu0
    %v946 = vmax.f32 %v943, 0.0
    %v947 = vpack.c.bf16 %v946, %v946
    %v948 = vld [vmem:[#allocation13] sm:$0xf]
    %v949 = vld [vmem:[#allocation13 + $0x4] sm:$0xf]
    %v950 = vld [vmem:[#allocation13 + $0x8] sm:$0xf]
    %v951 = vld [vmem:[#allocation13 + $0xc] sm:$0xf]
    %v952 = vld [vmem:[#allocation13 + $0x10] sm:$0xf]
    %v953 = vld [vmem:[#allocation13 + $0x14] sm:$0xf]
    %v954 = vld [vmem:[#allocation13 + $0x18] sm:$0xf]
    %v955 = vld [vmem:[#allocation13 + $0x1c] sm:$0xf]
    %v956 = vld [vmem:[#allocation13 + $0x20] sm:$0xf]
    %v957 = vld [vmem:[#allocation13 + $0x24] sm:$0xf]
    %v958 = vld [vmem:[#allocation13 + $0x28] sm:$0xf]
    %v959 = vld [vmem:[#allocation13 + $0x2c] sm:$0xf]
    %v960 = vld [vmem:[#allocation13 + $0x30] sm:$0xf]
    %v961 = vld [vmem:[#allocation13 + $0x34] sm:$0xf]
    %v962 = vld [vmem:[#allocation13 + $0x38] sm:$0xf]
    %v963 = vld [vmem:[#allocation13 + $0x3c] sm:$0xf]
    %v964 = vld [vmem:[%s8] sm:$0x1]
    %v966 = vperm.slane %v964, 0
    %v984 = vunpack.c.l.b16 %v948
    %v985 = vunpack.c.l.b16 %v949
    %v986 = vunpack.c.l.b16 %v950
    %v987 = vunpack.c.l.b16 %v951
    %v988 = vunpack.c.l.b16 %v952
    %v989 = vunpack.c.l.b16 %v953
    %v990 = vunpack.c.l.b16 %v954
    %v991 = vunpack.c.l.b16 %v955
    %v992 = vunpack.c.l.b16 %v956
    %v993 = vunpack.c.l.b16 %v957
    %v994 = vunpack.c.l.b16 %v958
    %v995 = vunpack.c.l.b16 %v959
    %v996 = vunpack.c.l.b16 %v960
    %v997 = vunpack.c.l.b16 %v961
    %v998 = vunpack.c.l.b16 %v962
    %v999 = vunpack.c.l.b16 %v963
    %v1000 = vpack.c.b16 %v985, %v984
    %v1001 = vpack.c.b16 %v987, %v986
    %v1002 = vpack.c.b16 %v989, %v988
    %v1003 = vpack.c.b16 %v991, %v990
    %v1004 = vpack.c.b16 %v993, %v992
    %v1005 = vpack.c.b16 %v995, %v994
    %v1006 = vpack.c.b16 %v997, %v996
    %v1007 = vpack.c.b16 %v999, %v998
    %1016 = vmatpush.bf16.msra.mxu0 %v1007
    %1017 = vmatpush.bf16.msra.mxu0 %v1006
    %1018 = vmatpush.bf16.msra.mxu0 %v1005
    %1019 = vmatpush.bf16.msra.mxu0 %v1004
    %1020 = vmatpush.bf16.msra.mxu0 %v1003
    %1021 = vmatpush.bf16.msra.mxu0 %v1002
    %1022 = vmatpush.bf16.msra.mxu0 %v1001
    %1023 = vmatpush.bf16.msra.mxu0 %v1000
    %1024 = vmatmul.bf16.gmra.mxu0 %v947
    %v1025 = vpop.f32.mrf.mxu0
    %v1026 = vadd.f32 %v966, %v1025
    %v1027 = vpop.f32.mrf.mxu0
    %1028 = vdwg.mxu0
    %1029 = vst [vmem:[#allocation14] sm:$0xff] %v1026
    // Predicated region
    $region66: #{tpu_custom_call.1} parent=1 // pred_check
      _
    $region67: #{tpu_custom_call.1} parent=1 // pred_check_branch
      %1031 = sbr.rel (0) target = $region69
    $region68: #{tpu_custom_call.1} parent=1 // pred_region
      %1033 = vsyncadd [#allocation4], 0
      %s1035 = sshll.u32 [#allocation14], 4
      %s1036 = int_to_ptr.vmem [resolvable:$true] %s1035
      %s1037 = sshll.u32 %s9, 4
      %s1038 = int_to_ptr.hbm [resolvable:$true] %s1037
      %1040 = dma.vmem_to_hbm [thread:$0]  %s1036, 128, %s1038, [#allocation4]
    $region69: #{tpu_custom_call.1} parent=1 // pred_fallthru
      _
    // Predicated region
    $region70: #{tpu_custom_call.1} parent=1 // pred_check
      _
    $region71: #{tpu_custom_call.1} parent=1 // pred_check_branch
      %1042 = sbr.rel (0) target = $region73
    $region72: #{tpu_custom_call.1} parent=1 // pred_region
      %1044 = dma.done [#allocation4], 128
    $region73: #{tpu_custom_call.1} parent=1 // pred_fallthru
      _
    %1045 = vsyncpa [#allocation3], 1
    %1046 = vsyncpa [#allocation6], 1
    %1047 = vsyncpa [#allocation9], 1
    %1048 = vsyncpa [#allocation12], 1
    %1049 = vsyncpa [#allocation4], 1

</llo_original>
